<compile_context>
chip_gen: v5e
topology: v5e:2x2
jax: 0.10.0
libtpu: 0.0.40
codegen_flags: <defaults>
</compile_context>

<pallas_src>
import jax
import jax.numpy as jnp
from jax.experimental import pallas as pl
from jax.experimental.pallas import tpu as pltpu


def _round_up(x, m):
    return ((x + m - 1) // m) * m


def occupancy_mlp_kernel(xt_ref, w1_ref, b1_ref, w2_ref, b2_ref, w3_ref,
                         b3_ref, o_ref):
    """One batch tile: xt_ref (D, TB)  ->  o_ref (1, TB)."""
    # ---- Layer 1 on the MXU: (8, D) @ (D, TB) -> (8, TB), lane-dense. ----
    h1 = jnp.dot(w1_ref[...], xt_ref[...],
                 preferred_element_type=jnp.float32,
                 precision=jax.lax.Precision.HIGHEST)
    h1 = jnp.maximum(h1 + b1_ref[...], 0.0)            # bias (8,1) bcast over lanes

    # ---- Layers 2 & 3 on the VPU: unrolled outer-product accumulation. ----
    w2 = w2_ref[...]                                    # (4, 8)
    h2 = w2[:, 0:1] * h1[0:1, :]                        # (4,1)*(1,TB) -> (4,TB)
    for k in range(1, 8):
        h2 = h2 + w2[:, k:k + 1] * h1[k:k + 1, :]
    h2 = jnp.maximum(h2 + b2_ref[...], 0.0)             # (4, TB)

    w3 = w3_ref[...]                                    # (1, 4)
    h3 = w3[:, 0:1] * h2[0:1, :]                        # (1, TB)
    for k in range(1, 4):
        h3 = h3 + w3[:, k:k + 1] * h2[k:k + 1, :]
    h3 = h3 + b3_ref[...]                               # (1, 1) bias

    # Sigmoid on the EUP; lane-dense (1, TB) store.
    o_ref[...] = jax.nn.sigmoid(h3).astype(o_ref.dtype)


def occupancy_nn_forward(x, params, *, block_batch=8192):
    """x: (B, input_size) float32; params: PyTorch-layout weights/biases.

    Returns (B, 1) float32, matching OccupancyNN.forward.
    """
    w1, b1 = params["w1"], params["b1"]      # (8, D), (8, 1)
    w2, b2 = params["w2"], params["b2"]      # (4, 8), (4, 1)
    w3, b3 = params["w3"], params["b3"]      # (1, 4), (1, 1)

    B, D = x.shape

    # Batch tile on the lane axis: multiple of 128.  At the default 8192 a
    # (D, TB) f32 tile is D*32 KiB (0.5 MiB at D=16); double-buffered x + out
    # tiles stay well under the scoped VMEM limit on v5e/v6e/v7x.
    tb = _round_up(min(block_batch, _round_up(B, 128)), 128)
    b_pad = _round_up(B, tb)

    # Batch-on-lanes layout: features on sublanes, batch on lanes.
    # (Ideally the producer already stores x as (D, B) to skip this transpose.)
    xt = x.T                                             # (D, B)
    if b_pad != B:
        xt = jnp.pad(xt, ((0, 0), (0, b_pad - B)))       # zero-pad, sliced off below

    # Weights/biases: single full-array blocks, constant index_map -> DMA'd
    # once and kept VMEM-resident across the whole grid.
    const = lambda a: pl.BlockSpec(a.shape, lambda i: (0, 0))

    out = pl.pallas_call(
        occupancy_mlp_kernel,
        out_shape=jax.ShapeDtypeStruct((1, b_pad), jnp.float32),
        grid_spec=pltpu.PrefetchScalarGridSpec(
            num_scalar_prefetch=0,
            grid=(b_pad // tb,),
            in_specs=[
                pl.BlockSpec((D, tb), lambda i: (0, i)),   # pipelined x tiles
                const(w1), const(b1),
                const(w2), const(b2),
                const(w3), const(b3),
            ],
            out_specs=pl.BlockSpec((1, tb), lambda i: (0, i)),
        ),
        compiler_params=pltpu.CompilerParams(
            # Batch axis is embarrassingly parallel -> shards across both
            # TensorCores on v7x; no-op on single-TC v5e/v6e.
            dimension_semantics=("parallel",),
        ),
    )(xt, w1, b1, w2, b2, w3, b3)

    return out[0, :B].reshape(B, 1)


def init_params(key, input_size):
    """PyTorch nn.Linear-style init; native (out, in) weights, (out, 1) biases."""
    ks = jax.random.split(key, 6)

    def u(k, shape, fan_in):
        bound = 1.0 / jnp.sqrt(jnp.float32(fan_in))
        return jax.random.uniform(k, shape, jnp.float32, -bound, bound)

    return {
        "w1": u(ks[0], (8, input_size), input_size),
        "b1": u(ks[1], (8, 1), input_size),
        "w2": u(ks[2], (4, 8), 8),
        "b2": u(ks[3], (4, 1), 8),
        "w3": u(ks[4], (1, 4), 4),
        "b3": u(ks[5], (1, 1), 4),
    }


def occupancy_nn_ref(x, params):
    """Pure-JAX reference (same precision as the kernel)."""
    hp = jax.lax.Precision.HIGHEST
    h1 = jnp.maximum(jnp.dot(x, params["w1"].T, precision=hp) + params["b1"].T, 0.0)
    h2 = jnp.maximum(jnp.dot(h1, params["w2"].T, precision=hp) + params["b2"].T, 0.0)
    return jax.nn.sigmoid(jnp.dot(h2, params["w3"].T, precision=hp) + params["b3"].T)


if __name__ == "__main__":
    key = jax.random.PRNGKey(0)
    k_x, k_p = jax.random.split(key)

    # Small demo shapes; batch deliberately not a multiple of 128 to exercise
    # the padding path, and a small tile to exercise a multi-step (3) grid.
    batch, input_size = 300, 16
    x = jax.random.normal(k_x, (batch, input_size), dtype=jnp.float32)
    params = init_params(k_p, input_size)

    out = occupancy_nn_forward(x, params, block_batch=128)
    out = jax.block_until_ready(out)

    ref = occupancy_nn_ref(x, params)
    assert out.shape == (batch, 1)
    assert jnp.allclose(out, ref, atol=1e-5, rtol=1e-5)

    print("KERNEL_OK")
</pallas_src>

<mosaic_0001>
module attributes {stable_mosaic.version = 11 : i64} {
  func.func @occupancy_mlp_kernel(%arg0: i32, %arg1: memref<16x128xf32, #tpu.memory_space<vmem>>, %arg2: memref<8x16xf32, #tpu.memory_space<vmem>>, %arg3: memref<8x1xf32, #tpu.memory_space<vmem>>, %arg4: memref<4x8xf32, #tpu.memory_space<vmem>>, %arg5: memref<4x1xf32, #tpu.memory_space<vmem>>, %arg6: memref<1x4xf32, #tpu.memory_space<vmem>>, %arg7: memref<1x1xf32, #tpu.memory_space<vmem>>, %arg8: memref<1x128xf32, #tpu.memory_space<vmem>>) attributes {dimension_semantics = [#tpu.dimension_semantics<parallel>], iteration_bounds = array<i64: 3>, scalar_prefetch = 0 : i64, scratch_operands = 0 : i64, tpu.core_type = #tpu.core_type<tc>, window_params = [{transform_indices = @transform_0, window_bounds = array<i64: 16, 128>}, {pipeline_mode = #tpu.pipeline_mode<synchronous>, transform_indices = @transform_1, window_bounds = array<i64: 8, 16>}, {pipeline_mode = #tpu.pipeline_mode<synchronous>, transform_indices = @transform_2, window_bounds = array<i64: 8, 1>}, {pipeline_mode = #tpu.pipeline_mode<synchronous>, transform_indices = @transform_3, window_bounds = array<i64: 4, 8>}, {pipeline_mode = #tpu.pipeline_mode<synchronous>, transform_indices = @transform_4, window_bounds = array<i64: 4, 1>}, {pipeline_mode = #tpu.pipeline_mode<synchronous>, transform_indices = @transform_5, window_bounds = array<i64: 1, 4>}, {pipeline_mode = #tpu.pipeline_mode<synchronous>, transform_indices = @transform_6, window_bounds = array<i64: 1, 1>}, {transform_indices = @transform_7, window_bounds = array<i64: 1, 128>}]} {
    %c0 = arith.constant 0 : index
    %c0_0 = arith.constant 0 : index
    %0 = vector.load %arg2[%c0, %c0_0] : memref<8x16xf32, #tpu.memory_space<vmem>>, vector<8x16xf32>
    %c0_1 = arith.constant 0 : index
    %c0_2 = arith.constant 0 : index
    %1 = vector.load %arg1[%c0_1, %c0_2] : memref<16x128xf32, #tpu.memory_space<vmem>>, vector<16x128xf32>
    %cst = arith.constant dense<0.000000e+00> : vector<8x128xf32>
    %2 = tpu.matmul %0, %1, %cst {dimension_numbers = #tpu.dot_dimension_numbers<[1], [0], [0], [1], [0, 0, 1, 1], [], []>, precision = #tpu.contract_precision<fp32>} : vector<8x16xf32>, vector<16x128xf32>, vector<8x128xf32> -> vector<8x128xf32>
    %c0_3 = arith.constant 0 : index
    %c0_4 = arith.constant 0 : index
    %3 = vector.load %arg3[%c0_3, %c0_4] : memref<8x1xf32, #tpu.memory_space<vmem>>, vector<8x1xf32>
    %4 = vector.broadcast %3 : vector<8x1xf32> to vector<8x128xf32>
    %5 = arith.addf %2, %4 : vector<8x128xf32>
    %cst_5 = arith.constant 0.000000e+00 : f32
    %6 = vector.broadcast %cst_5 : f32 to vector<8x128xf32>
    %7 = arith.maximumf %5, %6 : vector<8x128xf32>
    %c0_6 = arith.constant 0 : index
    %c0_7 = arith.constant 0 : index
    %8 = vector.load %arg4[%c0_6, %c0_7] : memref<4x8xf32, #tpu.memory_space<vmem>>, vector<4x8xf32>
    %9 = vector.extract_strided_slice %8 {offsets = [0, 0], sizes = [4, 1], strides = [1, 1]} : vector<4x8xf32> to vector<4x1xf32>
    %10 = vector.extract_strided_slice %7 {offsets = [0, 0], sizes = [1, 128], strides = [1, 1]} : vector<8x128xf32> to vector<1x128xf32>
    %11 = vector.broadcast %9 : vector<4x1xf32> to vector<4x128xf32>
    %12 = vector.broadcast %10 : vector<1x128xf32> to vector<4x128xf32>
    %13 = arith.mulf %11, %12 : vector<4x128xf32>
    %14 = vector.extract_strided_slice %8 {offsets = [0, 1], sizes = [4, 1], strides = [1, 1]} : vector<4x8xf32> to vector<4x1xf32>
    %15 = vector.extract_strided_slice %7 {offsets = [1, 0], sizes = [1, 128], strides = [1, 1]} : vector<8x128xf32> to vector<1x128xf32>
    %16 = vector.broadcast %14 : vector<4x1xf32> to vector<4x128xf32>
    %17 = vector.broadcast %15 : vector<1x128xf32> to vector<4x128xf32>
    %18 = arith.mulf %16, %17 : vector<4x128xf32>
    %19 = arith.addf %13, %18 : vector<4x128xf32>
    %20 = vector.extract_strided_slice %8 {offsets = [0, 2], sizes = [4, 1], strides = [1, 1]} : vector<4x8xf32> to vector<4x1xf32>
    %21 = vector.extract_strided_slice %7 {offsets = [2, 0], sizes = [1, 128], strides = [1, 1]} : vector<8x128xf32> to vector<1x128xf32>
    %22 = vector.broadcast %20 : vector<4x1xf32> to vector<4x128xf32>
    %23 = vector.broadcast %21 : vector<1x128xf32> to vector<4x128xf32>
    %24 = arith.mulf %22, %23 : vector<4x128xf32>
    %25 = arith.addf %19, %24 : vector<4x128xf32>
    %26 = vector.extract_strided_slice %8 {offsets = [0, 3], sizes = [4, 1], strides = [1, 1]} : vector<4x8xf32> to vector<4x1xf32>
    %27 = vector.extract_strided_slice %7 {offsets = [3, 0], sizes = [1, 128], strides = [1, 1]} : vector<8x128xf32> to vector<1x128xf32>
    %28 = vector.broadcast %26 : vector<4x1xf32> to vector<4x128xf32>
    %29 = vector.broadcast %27 : vector<1x128xf32> to vector<4x128xf32>
    %30 = arith.mulf %28, %29 : vector<4x128xf32>
    %31 = arith.addf %25, %30 : vector<4x128xf32>
    %32 = vector.extract_strided_slice %8 {offsets = [0, 4], sizes = [4, 1], strides = [1, 1]} : vector<4x8xf32> to vector<4x1xf32>
    %33 = vector.extract_strided_slice %7 {offsets = [4, 0], sizes = [1, 128], strides = [1, 1]} : vector<8x128xf32> to vector<1x128xf32>
    %34 = vector.broadcast %32 : vector<4x1xf32> to vector<4x128xf32>
    %35 = vector.broadcast %33 : vector<1x128xf32> to vector<4x128xf32>
    %36 = arith.mulf %34, %35 : vector<4x128xf32>
    %37 = arith.addf %31, %36 : vector<4x128xf32>
    %38 = vector.extract_strided_slice %8 {offsets = [0, 5], sizes = [4, 1], strides = [1, 1]} : vector<4x8xf32> to vector<4x1xf32>
    %39 = vector.extract_strided_slice %7 {offsets = [5, 0], sizes = [1, 128], strides = [1, 1]} : vector<8x128xf32> to vector<1x128xf32>
    %40 = vector.broadcast %38 : vector<4x1xf32> to vector<4x128xf32>
    %41 = vector.broadcast %39 : vector<1x128xf32> to vector<4x128xf32>
    %42 = arith.mulf %40, %41 : vector<4x128xf32>
    %43 = arith.addf %37, %42 : vector<4x128xf32>
    %44 = vector.extract_strided_slice %8 {offsets = [0, 6], sizes = [4, 1], strides = [1, 1]} : vector<4x8xf32> to vector<4x1xf32>
    %45 = vector.extract_strided_slice %7 {offsets = [6, 0], sizes = [1, 128], strides = [1, 1]} : vector<8x128xf32> to vector<1x128xf32>
    %46 = vector.broadcast %44 : vector<4x1xf32> to vector<4x128xf32>
    %47 = vector.broadcast %45 : vector<1x128xf32> to vector<4x128xf32>
    %48 = arith.mulf %46, %47 : vector<4x128xf32>
    %49 = arith.addf %43, %48 : vector<4x128xf32>
    %50 = vector.extract_strided_slice %8 {offsets = [0, 7], sizes = [4, 1], strides = [1, 1]} : vector<4x8xf32> to vector<4x1xf32>
    %51 = vector.extract_strided_slice %7 {offsets = [7, 0], sizes = [1, 128], strides = [1, 1]} : vector<8x128xf32> to vector<1x128xf32>
    %52 = vector.broadcast %50 : vector<4x1xf32> to vector<4x128xf32>
    %53 = vector.broadcast %51 : vector<1x128xf32> to vector<4x128xf32>
    %54 = arith.mulf %52, %53 : vector<4x128xf32>
    %55 = arith.addf %49, %54 : vector<4x128xf32>
    %c0_8 = arith.constant 0 : index
    %c0_9 = arith.constant 0 : index
    %56 = vector.load %arg5[%c0_8, %c0_9] : memref<4x1xf32, #tpu.memory_space<vmem>>, vector<4x1xf32>
    %57 = vector.broadcast %56 : vector<4x1xf32> to vector<4x128xf32>
    %58 = arith.addf %55, %57 : vector<4x128xf32>
    %cst_10 = arith.constant 0.000000e+00 : f32
    %59 = vector.broadcast %cst_10 : f32 to vector<4x128xf32>
    %60 = arith.maximumf %58, %59 : vector<4x128xf32>
    %c0_11 = arith.constant 0 : index
    %c0_12 = arith.constant 0 : index
    %61 = vector.load %arg6[%c0_11, %c0_12] : memref<1x4xf32, #tpu.memory_space<vmem>>, vector<1x4xf32>
    %62 = vector.extract_strided_slice %61 {offsets = [0, 0], sizes = [1, 1], strides = [1, 1]} : vector<1x4xf32> to vector<1x1xf32>
    %63 = vector.extract_strided_slice %60 {offsets = [0, 0], sizes = [1, 128], strides = [1, 1]} : vector<4x128xf32> to vector<1x128xf32>
    %64 = vector.broadcast %62 : vector<1x1xf32> to vector<1x128xf32>
    %65 = arith.mulf %64, %63 : vector<1x128xf32>
    %66 = vector.extract_strided_slice %61 {offsets = [0, 1], sizes = [1, 1], strides = [1, 1]} : vector<1x4xf32> to vector<1x1xf32>
    %67 = vector.extract_strided_slice %60 {offsets = [1, 0], sizes = [1, 128], strides = [1, 1]} : vector<4x128xf32> to vector<1x128xf32>
    %68 = vector.broadcast %66 : vector<1x1xf32> to vector<1x128xf32>
    %69 = arith.mulf %68, %67 : vector<1x128xf32>
    %70 = arith.addf %65, %69 : vector<1x128xf32>
    %71 = vector.extract_strided_slice %61 {offsets = [0, 2], sizes = [1, 1], strides = [1, 1]} : vector<1x4xf32> to vector<1x1xf32>
    %72 = vector.extract_strided_slice %60 {offsets = [2, 0], sizes = [1, 128], strides = [1, 1]} : vector<4x128xf32> to vector<1x128xf32>
    %73 = vector.broadcast %71 : vector<1x1xf32> to vector<1x128xf32>
    %74 = arith.mulf %73, %72 : vector<1x128xf32>
    %75 = arith.addf %70, %74 : vector<1x128xf32>
    %76 = vector.extract_strided_slice %61 {offsets = [0, 3], sizes = [1, 1], strides = [1, 1]} : vector<1x4xf32> to vector<1x1xf32>
    %77 = vector.extract_strided_slice %60 {offsets = [3, 0], sizes = [1, 128], strides = [1, 1]} : vector<4x128xf32> to vector<1x128xf32>
    %78 = vector.broadcast %76 : vector<1x1xf32> to vector<1x128xf32>
    %79 = arith.mulf %78, %77 : vector<1x128xf32>
    %80 = arith.addf %75, %79 : vector<1x128xf32>
    %c0_13 = arith.constant 0 : index
    %c0_14 = arith.constant 0 : index
    %81 = vector.load %arg7[%c0_13, %c0_14] : memref<1x1xf32, #tpu.memory_space<vmem>>, vector<1x1xf32>
    %82 = vector.broadcast %81 : vector<1x1xf32> to vector<1x128xf32>
    %83 = arith.addf %80, %82 : vector<1x128xf32>
    %84 = arith.negf %83 : vector<1x128xf32>
    %85 = math.exp %84 : vector<1x128xf32>
    %cst_15 = arith.constant 1.000000e+00 : f32
    %86 = vector.broadcast %cst_15 : f32 to vector<1x128xf32>
    %87 = arith.addf %86, %85 : vector<1x128xf32>
    %88 = arith.divf %86, %87 : vector<1x128xf32>
    %c0_16 = arith.constant 0 : index
    %c0_17 = arith.constant 0 : index
    %89 = vector.load %arg8[%c0_16, %c0_17] : memref<1x128xf32, #tpu.memory_space<vmem>>, vector<1x128xf32>
    tpu.vector_store %arg8[%c0_16, %c0_17], %88 {strides = array<i32>} : memref<1x128xf32, #tpu.memory_space<vmem>>, vector<1x128xf32>,
    return
  }
  func.func @transform_0(%arg0: i32) -> (i32, i32) {
    %c0_i32 = arith.constant 0 : i32
    %c0_i32_0 = arith.constant 0 : i32
    return %c0_i32, %arg0 : i32, i32
  }
  func.func @transform_1(%arg0: i32) -> (i32, i32) {
    %c0_i32 = arith.constant 0 : i32
    %c0_i32_0 = arith.constant 0 : i32
    %c0_i32_1 = arith.constant 0 : i32
    return %c0_i32, %c0_i32_0 : i32, i32
  }
  func.func @transform_2(%arg0: i32) -> (i32, i32) {
    %c0_i32 = arith.constant 0 : i32
    %c0_i32_0 = arith.constant 0 : i32
    %c0_i32_1 = arith.constant 0 : i32
    return %c0_i32, %c0_i32_0 : i32, i32
  }
  func.func @transform_3(%arg0: i32) -> (i32, i32) {
    %c0_i32 = arith.constant 0 : i32
    %c0_i32_0 = arith.constant 0 : i32
    %c0_i32_1 = arith.constant 0 : i32
    return %c0_i32, %c0_i32_0 : i32, i32
  }
  func.func @transform_4(%arg0: i32) -> (i32, i32) {
    %c0_i32 = arith.constant 0 : i32
    %c0_i32_0 = arith.constant 0 : i32
    %c0_i32_1 = arith.constant 0 : i32
    return %c0_i32, %c0_i32_0 : i32, i32
  }
  func.func @transform_5(%arg0: i32) -> (i32, i32) {
    %c0_i32 = arith.constant 0 : i32
    %c0_i32_0 = arith.constant 0 : i32
    %c0_i32_1 = arith.constant 0 : i32
    return %c0_i32, %c0_i32_0 : i32, i32
  }
  func.func @transform_6(%arg0: i32) -> (i32, i32) {
    %c0_i32 = arith.constant 0 : i32
    %c0_i32_0 = arith.constant 0 : i32
    %c0_i32_1 = arith.constant 0 : i32
    return %c0_i32, %c0_i32_0 : i32, i32
  }
  func.func @transform_7(%arg0: i32) -> (i32, i32) {
    %c0_i32 = arith.constant 0 : i32
    %c0_i32_0 = arith.constant 0 : i32
    return %c0_i32, %arg0 : i32, i32
  }
}

</mosaic_0001>

<llo_original>
// kernel: tpu_custom_call.1
$region0: #{tpu_custom_call.1}
  #allocation0 [shape = 'u32[]', space=smem, size = 0x4, offset = 0x4, fixed_abs, tag = 'smem constant byte address 0x4 - core index']
  #allocation1 [shape = 'u32[72,128]{1,0:T(1,128)}', space=vmem, size = 0x9000, scoped, tag = 'internal scratch']
  #allocation2 [shape = 'f32[1,1]{1,0:T(1,128)S(1)}', space=vmem, size = 0x200, scoped, tag = 'scoped memory for tpu_custom_call.1']
  %s0 = inlined_call_operand.hbm [shape: f32[16,384], index: 0, kind: input, shape index: {}]
  %s1 = inlined_call_operand.vmem [shape: f32[8,16], index: 1, kind: input, shape index: {}]
  %s2 = inlined_call_operand.vmem [shape: f32[8,1], index: 2, kind: input, shape index: {}]
  %s3 = inlined_call_operand.vmem [shape: f32[4,8], index: 3, kind: input, shape index: {}]
  %s4 = inlined_call_operand.vmem [shape: f32[4,1], index: 4, kind: input, shape index: {}]
  %s5 = inlined_call_operand.vmem [shape: f32[1,4], index: 5, kind: input, shape index: {}]
  %s6 = inlined_call_operand.<no memory space> [shape: f32[1,1], index: 6, kind: input, shape index: {}]
  %s7 = inlined_call_operand.hbm [shape: f32[1,384], index: 7, kind: output, shape index: {}]
  %s8 = sld [smem:[#allocation0]]
  $region65: #{tpu_custom_call.1} parent=0
    _
  %s10 = ssub.s32 1, %s8
  %s11 = scalar_select 0, %s10, %s8
  %v12 = vstv %s6
  %13 = vst [vmem:[#allocation2] sm:$0x1] %v12
  $region1: #{tpu_custom_call.1} parent=0
    #allocation3 [shape = 'u8[16384]{0}', space=vmem, size = 0x4000, scoped, tag = 'input window, operand 0']
    #allocation4 [shape = 's32[2]{0}', space=sflag, size = 0x8, scoped, tag = 'scoped memory for tpu_custom_call.1']
    #allocation5 [shape = 's32[2]{0}', space=sflag, size = 0x8, scoped, tag = 'scoped memory for tpu_custom_call.1']
    #allocation6 [shape = 'u8[1024]{0}', space=vmem, size = 0x400, scoped, tag = 'output window, operand 0']
    %14 = vsyncpa [#allocation4], 0
    %s15 = scalar_lea.sflag [#allocation4], 1
    %16 = vsyncpa %s15, 0
    %17 = vsyncpa [#allocation5], 0
    %s18 = scalar_lea.sflag [#allocation5], 1
    %19 = vsyncpa %s18, 0
    loop: start=0, step=1, limit=5
    $region2: #{tpu_custom_call.1} parent=1 // loop_pre_header
      _
    $region3: #{tpu_custom_call.1} parent=1 // loop_header
      %s21 = sphi 0, %s25
      %p22 = scmp.ge.s32.totalorder %s21, 5
      %s31 = sphi 0, %s33
      %s34 = sphi 0, %s31
      %s35 = sphi 0, %s34
      %s51 = sphi 0, %s35
      %s55 = sphi 0, %s55
      %s57 = sphi 0, %s55
      %s58 = sphi 0, %s57
      %s72 = sphi 0, %s58
      %s76 = sphi 0, %s76
      %s78 = sphi 0, %s76
      %s79 = sphi 0, %s78
      %s93 = sphi 0, %s79
      %s97 = sphi 0, %s97
      %s99 = sphi 0, %s97
      %s100 = sphi 0, %s99
      %s114 = sphi 0, %s100
      %s118 = sphi 0, %s118
      %s120 = sphi 0, %s118
      %s121 = sphi 0, %s120
      %s135 = sphi 0, %s121
      %s139 = sphi 0, %s139
      %s141 = sphi 0, %s139
      %s142 = sphi 0, %s141
      %s156 = sphi 0, %s142
      %s160 = sphi 0, %s160
      %s162 = sphi 0, %s160
      %s163 = sphi 0, %s162
      %s177 = sphi 0, %s163
      %s183 = sphi 0, %s185
      %s186 = sphi 0, %s183
      %s187 = sphi 0, %s186
      %s203 = sphi 0, %s187
    $region4: #{tpu_custom_call.1} parent=1 // loop_header_branch
      %24 = sbr.rel (%p22) target = $region8
    $region5: #{tpu_custom_call.1} parent=1 // loop_body
      %s26 = ssub.s32 %s21, 1
      %s27 = ssub.s32 %s21, 2
      %s28 = sadd.s32 %s21, 1
      %s29 = ssub.s32 %s21, %s28
      %p30 = scmp.eq.s32.totalorder %s29, 0
      %s32 = sadd.s32 %s31, 1
      %s33 = scalar_select %p30, %s31, %s32
      %p36 = pneg %p30
      %p37 = scmp.eq.s32.totalorder %s21, 2
      %p38 = por %p36, %p37
      %p39 = scmp.ne.s32.totalorder %s31, %s34
      %p40 = scmp.eq.s32.totalorder %s21, 0
      %p41 = por %p39, %p40
      %p42 = scmp.ne.s32.totalorder %s31, %s34
      %p43 = scmp.eq.s32.totalorder %s26, 2
      %p44 = por %p42, %p43
      %p45 = scmp.ne.s32.totalorder %s34, %s35
      %p46 = scmp.eq.s32.totalorder %s26, 0
      %p47 = por %p45, %p46
      %p48 = scmp.ne.s32.totalorder %s34, %s35
      %p49 = scmp.eq.s32.totalorder %s27, 2
      %p50 = por %p48, %p49
      %p52 = scmp.ne.s32.totalorder %s35, %s51
      %p53 = scmp.eq.s32.totalorder %s27, 0
      %p54 = por %p52, %p53
      %s56 = sadd.s32 %s55, 1
      %p59 = scmp.eq.s32.totalorder %s21, 2
      %p60 = scmp.ne.s32.totalorder %s55, %s57
      %p61 = scmp.eq.s32.totalorder %s21, 0
      %p62 = por %p60, %p61
      %p63 = scmp.ne.s32.totalorder %s55, %s57
      %p64 = scmp.eq.s32.totalorder %s26, 2
      %p65 = por %p63, %p64
      %p66 = scmp.ne.s32.totalorder %s57, %s58
      %p67 = scmp.eq.s32.totalorder %s26, 0
      %p68 = por %p66, %p67
      %p69 = scmp.ne.s32.totalorder %s57, %s58
      %p70 = scmp.eq.s32.totalorder %s27, 2
      %p71 = por %p69, %p70
      %p73 = scmp.ne.s32.totalorder %s58, %s72
      %p74 = scmp.eq.s32.totalorder %s27, 0
      %p75 = por %p73, %p74
      %s77 = sadd.s32 %s76, 1
      %p80 = scmp.eq.s32.totalorder %s21, 2
      %p81 = scmp.ne.s32.totalorder %s76, %s78
      %p82 = scmp.eq.s32.totalorder %s21, 0
      %p83 = por %p81, %p82
      %p84 = scmp.ne.s32.totalorder %s76, %s78
      %p85 = scmp.eq.s32.totalorder %s26, 2
      %p86 = por %p84, %p85
      %p87 = scmp.ne.s32.totalorder %s78, %s79
      %p88 = scmp.eq.s32.totalorder %s26, 0
      %p89 = por %p87, %p88
      %p90 = scmp.ne.s32.totalorder %s78, %s79
      %p91 = scmp.eq.s32.totalorder %s27, 2
      %p92 = por %p90, %p91
      %p94 = scmp.ne.s32.totalorder %s79, %s93
      %p95 = scmp.eq.s32.totalorder %s27, 0
      %p96 = por %p94, %p95
      %s98 = sadd.s32 %s97, 1
      %p101 = scmp.eq.s32.totalorder %s21, 2
      %p102 = scmp.ne.s32.totalorder %s97, %s99
      %p103 = scmp.eq.s32.totalorder %s21, 0
      %p104 = por %p102, %p103
      %p105 = scmp.ne.s32.totalorder %s97, %s99
      %p106 = scmp.eq.s32.totalorder %s26, 2
      %p107 = por %p105, %p106
      %p108 = scmp.ne.s32.totalorder %s99, %s100
      %p109 = scmp.eq.s32.totalorder %s26, 0
      %p110 = por %p108, %p109
      %p111 = scmp.ne.s32.totalorder %s99, %s100
      %p112 = scmp.eq.s32.totalorder %s27, 2
      %p113 = por %p111, %p112
      %p115 = scmp.ne.s32.totalorder %s100, %s114
      %p116 = scmp.eq.s32.totalorder %s27, 0
      %p117 = por %p115, %p116
      %s119 = sadd.s32 %s118, 1
      %p122 = scmp.eq.s32.totalorder %s21, 2
      %p123 = scmp.ne.s32.totalorder %s118, %s120
      %p124 = scmp.eq.s32.totalorder %s21, 0
      %p125 = por %p123, %p124
      %p126 = scmp.ne.s32.totalorder %s118, %s120
      %p127 = scmp.eq.s32.totalorder %s26, 2
      %p128 = por %p126, %p127
      %p129 = scmp.ne.s32.totalorder %s120, %s121
      %p130 = scmp.eq.s32.totalorder %s26, 0
      %p131 = por %p129, %p130
      %p132 = scmp.ne.s32.totalorder %s120, %s121
      %p133 = scmp.eq.s32.totalorder %s27, 2
      %p134 = por %p132, %p133
      %p136 = scmp.ne.s32.totalorder %s121, %s135
      %p137 = scmp.eq.s32.totalorder %s27, 0
      %p138 = por %p136, %p137
      %s140 = sadd.s32 %s139, 1
      %p143 = scmp.eq.s32.totalorder %s21, 2
      %p144 = scmp.ne.s32.totalorder %s139, %s141
      %p145 = scmp.eq.s32.totalorder %s21, 0
      %p146 = por %p144, %p145
      %p147 = scmp.ne.s32.totalorder %s139, %s141
      %p148 = scmp.eq.s32.totalorder %s26, 2
      %p149 = por %p147, %p148
      %p150 = scmp.ne.s32.totalorder %s141, %s142
      %p151 = scmp.eq.s32.totalorder %s26, 0
      %p152 = por %p150, %p151
      %p153 = scmp.ne.s32.totalorder %s141, %s142
      %p154 = scmp.eq.s32.totalorder %s27, 2
      %p155 = por %p153, %p154
      %p157 = scmp.ne.s32.totalorder %s142, %s156
      %p158 = scmp.eq.s32.totalorder %s27, 0
      %p159 = por %p157, %p158
      %s161 = sadd.s32 %s160, 1
      %p164 = scmp.eq.s32.totalorder %s21, 2
      %p165 = scmp.ne.s32.totalorder %s160, %s162
      %p166 = scmp.eq.s32.totalorder %s21, 0
      %p167 = por %p165, %p166
      %p168 = scmp.ne.s32.totalorder %s160, %s162
      %p169 = scmp.eq.s32.totalorder %s26, 2
      %p170 = por %p168, %p169
      %p171 = scmp.ne.s32.totalorder %s162, %s163
      %p172 = scmp.eq.s32.totalorder %s26, 0
      %p173 = por %p171, %p172
      %p174 = scmp.ne.s32.totalorder %s162, %s163
      %p175 = scmp.eq.s32.totalorder %s27, 2
      %p176 = por %p174, %p175
      %p178 = scmp.ne.s32.totalorder %s163, %s177
      %p179 = scmp.eq.s32.totalorder %s27, 0
      %p180 = por %p178, %p179
      %s181 = ssub.s32 %s21, %s28
      %p182 = scmp.eq.s32.totalorder %s181, 0
      %s184 = sadd.s32 %s183, 1
      %s185 = scalar_select %p182, %s183, %s184
      %p188 = pneg %p182
      %p189 = scmp.eq.s32.totalorder %s21, 2
      %p190 = por %p188, %p189
      %p191 = scmp.ne.s32.totalorder %s183, %s186
      %p192 = scmp.eq.s32.totalorder %s21, 0
      %p193 = por %p191, %p192
      %p194 = scmp.ne.s32.totalorder %s183, %s186
      %p195 = scmp.eq.s32.totalorder %s26, 2
      %p196 = por %p194, %p195
      %p197 = scmp.ne.s32.totalorder %s186, %s187
      %p198 = scmp.eq.s32.totalorder %s26, 0
      %p199 = por %p197, %p198
      %p200 = scmp.ne.s32.totalorder %s186, %s187
      %p201 = scmp.eq.s32.totalorder %s27, 2
      %p202 = por %p200, %p201
      %p204 = scmp.ne.s32.totalorder %s187, %s203
      %p205 = scmp.eq.s32.totalorder %s27, 0
      %p206 = por %p204, %p205
      %p207 = scmp.le.s32.totalorder 1, %s21
      %p208 = scmp.lt.s32.totalorder %s21, 4
      %p209 = pnand %p207, %p208
      %p210 = pneg %p209
      // Predicated region
      $region9: #{tpu_custom_call.1} parent=5 // pred_check
        _
      $region10: #{tpu_custom_call.1} parent=5 // pred_check_branch
        %212 = sbr.rel (%p209) target = $region12
      $region11: #{tpu_custom_call.1} parent=5 // pred_region
        %s213 = ssub.s32 %s21, 1
        // Predicated region
        $region13: #{tpu_custom_call.1} parent=11 // pred_check
          %p214 = pneg %p68
        $region14: #{tpu_custom_call.1} parent=11 // pred_check_branch
          %216 = sbr.rel (%p214) target = $region16
        $region15: #{tpu_custom_call.1} parent=11 // pred_region
          _
        $region16: #{tpu_custom_call.1} parent=11 // pred_fallthru
          _
        // Predicated region
        $region17: #{tpu_custom_call.1} parent=11 // pred_check
          %p217 = pneg %p89
        $region18: #{tpu_custom_call.1} parent=11 // pred_check_branch
          %219 = sbr.rel (%p217) target = $region20
        $region19: #{tpu_custom_call.1} parent=11 // pred_region
          _
        $region20: #{tpu_custom_call.1} parent=11 // pred_fallthru
          _
        // Predicated region
        $region21: #{tpu_custom_call.1} parent=11 // pred_check
          %p220 = pneg %p110
        $region22: #{tpu_custom_call.1} parent=11 // pred_check_branch
          %222 = sbr.rel (%p220) target = $region24
        $region23: #{tpu_custom_call.1} parent=11 // pred_region
          _
        $region24: #{tpu_custom_call.1} parent=11 // pred_fallthru
          _
        // Predicated region
        $region25: #{tpu_custom_call.1} parent=11 // pred_check
          %p223 = pneg %p131
        $region26: #{tpu_custom_call.1} parent=11 // pred_check_branch
          %225 = sbr.rel (%p223) target = $region28
        $region27: #{tpu_custom_call.1} parent=11 // pred_region
          _
        $region28: #{tpu_custom_call.1} parent=11 // pred_fallthru
          _
        // Predicated region
        $region29: #{tpu_custom_call.1} parent=11 // pred_check
          %p226 = pneg %p152
        $region30: #{tpu_custom_call.1} parent=11 // pred_check_branch
          %228 = sbr.rel (%p226) target = $region32
        $region31: #{tpu_custom_call.1} parent=11 // pred_region
          _
        $region32: #{tpu_custom_call.1} parent=11 // pred_fallthru
          _
        // Predicated region
        $region33: #{tpu_custom_call.1} parent=11 // pred_check
          %p229 = pneg %p173
        $region34: #{tpu_custom_call.1} parent=11 // pred_check_branch
          %231 = sbr.rel (%p229) target = $region36
        $region35: #{tpu_custom_call.1} parent=11 // pred_region
          _
        $region36: #{tpu_custom_call.1} parent=11 // pred_fallthru
          _
      $region12: #{tpu_custom_call.1} parent=5 // pred_fallthru
        _
      %p232 = scmp.lt.s32.totalorder %s21, 3
      // Predicated region
      $region37: #{tpu_custom_call.1} parent=5 // pred_check
        %p233 = pneg %p232
      $region38: #{tpu_custom_call.1} parent=5 // pred_check_branch
        %235 = sbr.rel (%p233) target = $region40
      $region39: #{tpu_custom_call.1} parent=5 // pred_region
        // Predicated region
        $region41: #{tpu_custom_call.1} parent=39 // pred_check
          %p236 = pneg %p41
        $region42: #{tpu_custom_call.1} parent=39 // pred_check_branch
          %238 = sbr.rel (%p236) target = $region44
        $region43: #{tpu_custom_call.1} parent=39 // pred_region
          %s239 = sand.u32 %s31, 1
          %s240 = scalar_lea.sflag [#allocation4], %s239
          %s241 = sand.u32 %s31, 1
          %s242 = smul.addr %s241, 16
          %s243 = scalar_lea.vmem [#allocation3], %s242
          %245 = vsyncadd %s240, 0
          %s246 = smul.addr %s21, 8
          %s247 = scalar_lea.hbm %s0, %s246
          %s248 = sshll.u32 %s247, 4
          %s249 = int_to_ptr.hbm [resolvable:$true] %s248
          %s250 = sshll.u32 %s243, 4
          %s251 = int_to_ptr.vmem [resolvable:$true] %s250
          %256 = dma.hbm_to_vmem [thread:$0]  %s249, 256, %s251, %s240, 384, 128, 8
        $region44: #{tpu_custom_call.1} parent=39 // pred_fallthru
          _
      $region40: #{tpu_custom_call.1} parent=5 // pred_fallthru
        _
      %p257 = scmp.le.s32.totalorder 1, %s21
      %p258 = scmp.lt.s32.totalorder %s21, 4
      %p259 = pnand %p257, %p258
      %p260 = pneg %p259
      // Predicated region
      $region45: #{tpu_custom_call.1} parent=5 // pred_check
        _
      $region46: #{tpu_custom_call.1} parent=5 // pred_check_branch
        %262 = sbr.rel (%p259) target = $region48
      $region47: #{tpu_custom_call.1} parent=5 // pred_region
        %s263 = ssub.s32 %s21, 1
        %s264 = sand.u32 %s34, 1
        %s265 = scalar_lea.sflag [#allocation4], %s264
        %s266 = sand.u32 %s34, 1
        %s267 = smul.addr %s266, 16
        %s268 = scalar_lea.vmem [#allocation3], %s267
        // Predicated region
        $region49: #{tpu_custom_call.1} parent=47 // pred_check
          %p269 = pneg %p47
        $region50: #{tpu_custom_call.1} parent=47 // pred_check_branch
          %271 = sbr.rel (%p269) target = $region52
        $region51: #{tpu_custom_call.1} parent=47 // pred_region
          %273 = dma.done %s265, 256
        $region52: #{tpu_custom_call.1} parent=47 // pred_fallthru
          _
        %s274 = sand.u32 %s34, 1
        %s275 = scalar_lea.sflag [#allocation4], %s274
        %s276 = sand.u32 %s34, 1
        %s277 = smul.addr %s276, 16
        %s278 = scalar_lea.vmem [#allocation3], %s277
        %p279 = pneg %p47
        %p280 = pneg %p44
        %p281 = pneg %p68
        %p282 = pneg %p65
        %p283 = pneg %p89
        %p284 = pneg %p86
        %p285 = pneg %p110
        %p286 = pneg %p107
        %p287 = pneg %p131
        %p288 = pneg %p128
        %p289 = pneg %p152
        %p290 = pneg %p149
        %p291 = pneg %p173
        %p292 = pneg %p170
        %p293 = pneg %p199
        %p294 = pneg %p196
        %s295 = sand.u32 %s186, 1
        %s296 = scalar_lea.sflag [#allocation5], %s295
        %s297 = sand.u32 %s186, 1
        %s298 = scalar_lea.vmem [#allocation6], %s297
        %v299 = vld [vmem:[%s1] sm:$0xff]
        %v300 = vld [vmem:[%s268] sm:$0xff]
        %v301 = vld [vmem:[%s268 + $0x8] sm:$0xff]
        %v302 = vld [vmem:[%s2] sm:$0xff]
        %304 = vset.pattern.permute.xlu0 0
        %305 = vperm.xlu0 %304, %v302
        %v306 = vpop.permute.xlu0 %305
        %vm308 = vcmask 130048
        %v310 = vsel %vm308, %v299, 0
        %312 = vmatpush.msra.mxu0 0.0
        %313 = vmatpush.msra.mxu0 0.0
        %314 = vmatpush.msra.mxu0 0.0
        %315 = vmatpush.msra.mxu0 0.0
        %316 = vmatpush.msra.mxu0 0.0
        %317 = vmatpush.msra.mxu0 0.0
        %318 = vmatpush.msra.mxu0 0.0
        %319 = vmatpush.msra.mxu0 0.0
        %320 = vmatpush.msra.mxu0 0.0
        %321 = vmatpush.msra.mxu0 0.0
        %322 = vmatpush.msra.mxu0 0.0
        %323 = vmatpush.msra.mxu0 0.0
        %324 = vmatpush.msra.mxu0 0.0
        %325 = vmatpush.msra.mxu0 0.0
        %v326 = vand.u32 %v301, 4294901760
        %327 = vmatpush.msra.mxu0 %v326
        %v328 = vand.u32 %v300, 4294901760
        %329 = vmatpush.msra.mxu0 %v328
        %v330 = vand.u32 %v310, 4294901760
        %v331 = vsub.f32 %v310, %v330
        %v332 = vand.u32 %v331, 4294901760
        %v333 = vsub.f32 %v331, %v332
        %v334 = vand.u32 %v333, 4294901760
        %335 = vmatmul.f32.gmra.mxu0 %v334
        %v336 = vpop.f32.mrf.mxu0
        %v337 = vadd.f32 %v306, %v336
        %338 = vdwg.mxu0
        %339 = vmatpush.msra.mxu0 0.0
        %340 = vmatpush.msra.mxu0 0.0
        %341 = vmatpush.msra.mxu0 0.0
        %342 = vmatpush.msra.mxu0 0.0
        %343 = vmatpush.msra.mxu0 0.0
        %344 = vmatpush.msra.mxu0 0.0
        %345 = vmatpush.msra.mxu0 0.0
        %346 = vmatpush.msra.mxu0 0.0
        %347 = vmatpush.msra.mxu0 0.0
        %348 = vmatpush.msra.mxu0 0.0
        %349 = vmatpush.msra.mxu0 0.0
        %350 = vmatpush.msra.mxu0 0.0
        %351 = vmatpush.msra.mxu0 0.0
        %352 = vmatpush.msra.mxu0 0.0
        %v353 = vand.u32 %v301, 4294901760
        %v354 = vsub.f32 %v301, %v353
        %v355 = vand.u32 %v354, 4294901760
        %v356 = vsub.f32 %v354, %v355
        %v357 = vand.u32 %v356, 4294901760
        %358 = vmatpush.msra.mxu0 %v357
        %v359 = vand.u32 %v300, 4294901760
        %v360 = vsub.f32 %v300, %v359
        %v361 = vand.u32 %v360, 4294901760
        %v362 = vsub.f32 %v360, %v361
        %v363 = vand.u32 %v362, 4294901760
        %364 = vmatpush.msra.mxu0 %v363
        %v365 = vand.u32 %v310, 4294901760
        %366 = vmatmul.f32.gmra.mxu0 %v365
        %v367 = vpop.f32.mrf.mxu0
        %v368 = vadd.f32 %v337, %v367
        %369 = vdwg.mxu0
        %370 = vmatpush.msra.mxu0 0.0
        %371 = vmatpush.msra.mxu0 0.0
        %372 = vmatpush.msra.mxu0 0.0
        %373 = vmatpush.msra.mxu0 0.0
        %374 = vmatpush.msra.mxu0 0.0
        %375 = vmatpush.msra.mxu0 0.0
        %376 = vmatpush.msra.mxu0 0.0
        %377 = vmatpush.msra.mxu0 0.0
        %378 = vmatpush.msra.mxu0 0.0
        %379 = vmatpush.msra.mxu0 0.0
        %380 = vmatpush.msra.mxu0 0.0
        %381 = vmatpush.msra.mxu0 0.0
        %382 = vmatpush.msra.mxu0 0.0
        %383 = vmatpush.msra.mxu0 0.0
        %v384 = vand.u32 %v301, 4294901760
        %v385 = vsub.f32 %v301, %v384
        %386 = vmatpush.msra.mxu0 %v385
        %v387 = vand.u32 %v300, 4294901760
        %v388 = vsub.f32 %v300, %v387
        %389 = vmatpush.msra.mxu0 %v388
        %v390 = vand.u32 %v310, 4294901760
        %v391 = vsub.f32 %v310, %v390
        %392 = vmatmul.f32.gmra.mxu0 %v391
        %v393 = vpop.f32.mrf.mxu0
        %v394 = vadd.f32 %v368, %v393
        %395 = vdwg.mxu0
        %396 = vmatpush.msra.mxu0 0.0
        %397 = vmatpush.msra.mxu0 0.0
        %398 = vmatpush.msra.mxu0 0.0
        %399 = vmatpush.msra.mxu0 0.0
        %400 = vmatpush.msra.mxu0 0.0
        %401 = vmatpush.msra.mxu0 0.0
        %402 = vmatpush.msra.mxu0 0.0
        %403 = vmatpush.msra.mxu0 0.0
        %404 = vmatpush.msra.mxu0 0.0
        %405 = vmatpush.msra.mxu0 0.0
        %406 = vmatpush.msra.mxu0 0.0
        %407 = vmatpush.msra.mxu0 0.0
        %408 = vmatpush.msra.mxu0 0.0
        %409 = vmatpush.msra.mxu0 0.0
        %v410 = vand.u32 %v301, 4294901760
        %411 = vmatpush.msra.mxu0 %v410
        %v412 = vand.u32 %v300, 4294901760
        %413 = vmatpush.msra.mxu0 %v412
        %v414 = vand.u32 %v310, 4294901760
        %v415 = vsub.f32 %v310, %v414
        %v416 = vand.u32 %v415, 4294901760
        %417 = vmatmul.f32.gmra.mxu0 %v416
        %v418 = vpop.f32.mrf.mxu0
        %v419 = vadd.f32 %v394, %v418
        %420 = vdwg.mxu0
        %421 = vmatpush.msra.mxu0 0.0
        %422 = vmatpush.msra.mxu0 0.0
        %423 = vmatpush.msra.mxu0 0.0
        %424 = vmatpush.msra.mxu0 0.0
        %425 = vmatpush.msra.mxu0 0.0
        %426 = vmatpush.msra.mxu0 0.0
        %427 = vmatpush.msra.mxu0 0.0
        %428 = vmatpush.msra.mxu0 0.0
        %429 = vmatpush.msra.mxu0 0.0
        %430 = vmatpush.msra.mxu0 0.0
        %431 = vmatpush.msra.mxu0 0.0
        %432 = vmatpush.msra.mxu0 0.0
        %433 = vmatpush.msra.mxu0 0.0
        %434 = vmatpush.msra.mxu0 0.0
        %v435 = vand.u32 %v301, 4294901760
        %v436 = vsub.f32 %v301, %v435
        %v437 = vand.u32 %v436, 4294901760
        %438 = vmatpush.msra.mxu0 %v437
        %v439 = vand.u32 %v300, 4294901760
        %v440 = vsub.f32 %v300, %v439
        %v441 = vand.u32 %v440, 4294901760
        %442 = vmatpush.msra.mxu0 %v441
        %v443 = vand.u32 %v310, 4294901760
        %444 = vmatmul.f32.gmra.mxu0 %v443
        %v445 = vpop.f32.mrf.mxu0
        %v446 = vadd.f32 %v419, %v445
        %447 = vdwg.mxu0
        %448 = vmatpush.msra.mxu0 0.0
        %449 = vmatpush.msra.mxu0 0.0
        %450 = vmatpush.msra.mxu0 0.0
        %451 = vmatpush.msra.mxu0 0.0
        %452 = vmatpush.msra.mxu0 0.0
        %453 = vmatpush.msra.mxu0 0.0
        %454 = vmatpush.msra.mxu0 0.0
        %455 = vmatpush.msra.mxu0 0.0
        %456 = vmatpush.msra.mxu0 0.0
        %457 = vmatpush.msra.mxu0 0.0
        %458 = vmatpush.msra.mxu0 0.0
        %459 = vmatpush.msra.mxu0 0.0
        %460 = vmatpush.msra.mxu0 0.0
        %461 = vmatpush.msra.mxu0 0.0
        %v462 = vand.u32 %v301, 4294901760
        %463 = vmatpush.msra.mxu0 %v462
        %v464 = vand.u32 %v300, 4294901760
        %465 = vmatpush.msra.mxu0 %v464
        %v466 = vand.u32 %v310, 4294901760
        %467 = vmatmul.f32.gmra.mxu0 %v466
        %v468 = vpop.f32.mrf.mxu0
        %v469 = vadd.f32 %v446, %v468
        %470 = vdwg.mxu0
        %v471 = vmax.f32 %v469, 0.0
        %v472 = vld [vmem:[%s3] sm:$0xf]
        %474 = vset.pattern.permute.xlu0 0
        %475 = vperm.xlu0 %474, %v472
        %v476 = vpop.permute.xlu0 %475
        %v478 = vperm.slane %v471, 0
        %v479 = vmul.f32 %v476, %v478
        %480 = vset.pattern.permute.xlu0 1
        %481 = vperm.xlu0 %480, %v472
        %v482 = vpop.permute.xlu0 %481
        %v484 = vperm.slane %v471, 1
        %v485 = vmul.f32 %v482, %v484
        %v486 = vadd.f32 %v479, %v485
        %487 = vset.pattern.permute.xlu0 2
        %488 = vperm.xlu0 %487, %v472
        %v489 = vpop.permute.xlu0 %488
        %v491 = vperm.slane %v471, 2
        %v492 = vmul.f32 %v489, %v491
        %v493 = vadd.f32 %v486, %v492
        %494 = vset.pattern.permute.xlu0 3
        %495 = vperm.xlu0 %494, %v472
        %v496 = vpop.permute.xlu0 %495
        %v498 = vperm.slane %v471, 3
        %v499 = vmul.f32 %v496, %v498
        %v500 = vadd.f32 %v493, %v499
        %501 = vset.pattern.permute.xlu0 4
        %502 = vperm.xlu0 %501, %v472
        %v503 = vpop.permute.xlu0 %502
        %v505 = vperm.slane %v471, 4
        %v506 = vmul.f32 %v503, %v505
        %v507 = vadd.f32 %v500, %v506
        %508 = vset.pattern.permute.xlu0 5
        %509 = vperm.xlu0 %508, %v472
        %v510 = vpop.permute.xlu0 %509
        %v512 = vperm.slane %v471, 5
        %v513 = vmul.f32 %v510, %v512
        %v514 = vadd.f32 %v507, %v513
        %515 = vset.pattern.permute.xlu0 6
        %516 = vperm.xlu0 %515, %v472
        %v517 = vpop.permute.xlu0 %516
        %v519 = vperm.slane %v471, 6
        %v520 = vmul.f32 %v517, %v519
        %v521 = vadd.f32 %v514, %v520
        %522 = vset.pattern.permute.xlu0 7
        %523 = vperm.xlu0 %522, %v472
        %v524 = vpop.permute.xlu0 %523
        %v526 = vperm.slane %v471, 7
        %v527 = vmul.f32 %v524, %v526
        %v528 = vadd.f32 %v521, %v527
        %v529 = vld [vmem:[%s4] sm:$0xf]
        %531 = vset.pattern.permute.xlu0 0
        %532 = vperm.xlu0 %531, %v529
        %v533 = vpop.permute.xlu0 %532
        %v535 = vadd.f32 %v528, %v533
        %v536 = vmax.f32 %v535, 0.0
        %v537 = vld [vmem:[%s5] sm:$0x1]
        %539 = vset.pattern.permute.xlu0 0
        %540 = vperm.xlu0 %539, %v537
        %v541 = vpop.permute.xlu0 %540
        %v543 = vperm.slane %v541, 0
        %v544 = vmul.f32 %v543, %v536
        %545 = vset.pattern.permute.xlu0 1
        %546 = vperm.xlu0 %545, %v537
        %v547 = vpop.permute.xlu0 %546
        %v549 = vperm.slane %v547, 0
        %v550 = vmul.f32 %v549, %v536
        %v552 = vrot.slane %v550, 1
        %v554 = vadd.f32 %v544, %v552
        %555 = vset.pattern.permute.xlu0 2
        %556 = vperm.xlu0 %555, %v537
        %v557 = vpop.permute.xlu0 %556
        %v559 = vperm.slane %v557, 0
        %v560 = vmul.f32 %v559, %v536
        %v562 = vrot.slane %v560, 2
        %v564 = vadd.f32 %v554, %v562
        %565 = vset.pattern.permute.xlu0 3
        %566 = vperm.xlu0 %565, %v537
        %v567 = vpop.permute.xlu0 %566
        %v569 = vperm.slane %v567, 0
        %v570 = vmul.f32 %v569, %v536
        %v572 = vrot.slane %v570, 3
        %v574 = vadd.f32 %v564, %v572
        %v575 = vld [vmem:[#allocation2] sm:$0x1]
        %577 = vset.pattern.permute.xlu0 0
        %578 = vperm.xlu0 %577, %v575
        %v579 = vpop.permute.xlu0 %578
        %v581 = vperm.slane %v579, 0
        %v582 = vadd.f32 %v574, %v581
        %v583 = vxor.u32 %v582, 2147483648
        %v584 = vmul.f32 %v583, 1.442695
        %v585 = vpow.pop %v584
        %v586 = vadd.f32 %v585, 1.0
        %v587 = vrcp.pop %v586
        %v588 = vmul.f32 %v586, %v587
        %v589 = vsub.f32 1.0, %v588
        %v590 = vmul.f32 %v587, %v589
        %v591 = vadd.f32 %v587, %v590
        %vm592 = vweird.f32 %v586
        %vm593 = vweird.f32 %v587
        %vm594 = vmor %vm592, %vm593
        %v595 = vsel %vm594, %v587, %v591
        %v596 = vand.u32 2147483647, %v586
        %vm597 = vcmp.eq.f32.partialorder %v596, 8.507059e+37
        %v598 = vand.u32 %v586, 2147483648
        %v599 = vor.u32 1.1754944e-38, %v598
        %v600 = vsel %vm597, %v599, %v595
        %v601 = vmul.f32 1.0, %v600
        %602 = vst [vmem:[%s298] sm:$0x1] %v601
        %s603 = sand.u32 %s186, 1
        %s604 = scalar_lea.sflag [#allocation5], %s603
        %s605 = sand.u32 %s186, 1
        %s606 = scalar_lea.vmem [#allocation6], %s605
        // Predicated region
        $region53: #{tpu_custom_call.1} parent=47 // pred_check
          %p607 = pneg %p196
        $region54: #{tpu_custom_call.1} parent=47 // pred_check_branch
          %609 = sbr.rel (%p607) target = $region56
        $region55: #{tpu_custom_call.1} parent=47 // pred_region
          %611 = vsyncadd %s604, 0
          %s612 = scalar_lea.hbm %s7, %s26
          %s614 = sshll.u32 %s606, 4
          %s615 = int_to_ptr.vmem [resolvable:$true] %s614
          %s616 = sshll.u32 %s612, 4
          %s617 = int_to_ptr.hbm [resolvable:$true] %s616
          %619 = dma.vmem_to_hbm [thread:$0]  %s615, 16, %s617, %s604
        $region56: #{tpu_custom_call.1} parent=47 // pred_fallthru
          _
      $region48: #{tpu_custom_call.1} parent=5 // pred_fallthru
        _
      %p620 = scmp.le.s32.totalorder 2, %s21
      // Predicated region
      $region57: #{tpu_custom_call.1} parent=5 // pred_check
        %p621 = pneg %p620
      $region58: #{tpu_custom_call.1} parent=5 // pred_check_branch
        %623 = sbr.rel (%p621) target = $region60
      $region59: #{tpu_custom_call.1} parent=5 // pred_region
        %s624 = ssub.s32 %s21, 2
        // Predicated region
        $region61: #{tpu_custom_call.1} parent=59 // pred_check
          %p625 = pneg %p202
        $region62: #{tpu_custom_call.1} parent=59 // pred_check_branch
          %627 = sbr.rel (%p625) target = $region64
        $region63: #{tpu_custom_call.1} parent=59 // pred_region
          %s628 = sand.u32 %s187, 1
          %s629 = scalar_lea.sflag [#allocation5], %s628
          %s630 = sand.u32 %s187, 1
          %s631 = scalar_lea.vmem [#allocation6], %s630
          %633 = dma.done %s629, 16
        $region64: #{tpu_custom_call.1} parent=59 // pred_fallthru
          _
      $region60: #{tpu_custom_call.1} parent=5 // pred_fallthru
        _
    $region6: #{tpu_custom_call.1} parent=1 // loop_footer
      %s25 = sadd.s32 1, %s21
    $region7: #{tpu_custom_call.1} parent=1 // loop_footer_branch
      %20 = sbr.rel target = $region3
    $region8: #{tpu_custom_call.1} parent=1 // loop_exit
      _
    %634 = vsyncpa [#allocation4], 1
    %s635 = scalar_lea.sflag [#allocation4], 1
    %636 = vsyncpa %s635, 1
    %637 = vsyncpa [#allocation5], 1
    %s638 = scalar_lea.sflag [#allocation5], 1
    %639 = vsyncpa %s638, 1

</llo_original>
